<compile_context>
chip_gen: v6e
topology: v6e:2x2x1
jax: 0.10.0
libtpu: 0.0.40
codegen_flags: <defaults>
</compile_context>

<pallas_src>
import functools

import jax
import jax.numpy as jnp
from jax.experimental import pallas as pl
from jax.experimental.pallas import tpu as pltpu


def _round_up(n: int, m: int) -> int:
    return ((n + m - 1) // m) * m


def _cdiv(a: int, b: int) -> int:
    return (a + b - 1) // b


def _feature_net_kernel(x_ref, w1_ref, b1_ref, w2_ref, b2_ref, o_ref):
    # Cast the activation tile to bf16 in-kernel (no separate XLA pad/cast pass).
    x = x_ref[...].astype(w1_ref.dtype)
    # fc1 on the MXU, f32 accumulation.
    h = jnp.dot(x, w1_ref[...], preferred_element_type=jnp.float32)
    # bias + ReLU on the VPU in f32 (v5e has no bf16 VPU path).
    h = jnp.maximum(h + b1_ref[...], 0.0)
    # fc2 at bf16 MXU rate, f32 accumulation.
    # (Keep h in f32 here instead for accuracy-sensitive / very wide hidden dims.)
    y = jnp.dot(h.astype(w2_ref.dtype), w2_ref[...],
                preferred_element_type=jnp.float32)
    o_ref[...] = (y + b2_ref[...]).astype(o_ref.dtype)


def prepare_params(w1, b1, w2, b2):
    """One-time (init-time) parameter prep: bf16 weights, f32 (1, dim) biases.

    Weights are stored (in, out), i.e. the transpose of PyTorch's (out, in).
    """
    return (w1.astype(jnp.bfloat16),
            b1.reshape(1, -1).astype(jnp.float32),
            w2.astype(jnp.bfloat16),
            b2.reshape(1, -1).astype(jnp.float32))


def feature_net_forward(x, w1, b1, w2, b2, *, block_m=512, out_dtype=jnp.bfloat16):
    """Fused FeatureNet forward.

    x  : (B, D_in)  float32 (or bf16)
    w1 : (D_in, H)  bfloat16   (from prepare_params)
    b1 : (1, H)     float32
    w2 : (H, D_out) bfloat16
    b2 : (1, D_out) float32
    returns (B, D_out) out_dtype
    """
    B, d_in = x.shape
    h_dim = w1.shape[1]
    d_out = w2.shape[1]
    out_dtype = jnp.dtype(out_dtype)

    # Sublane granularity for the batch-tiled blocks (16 when any tiled
    # activation stream is sub-32-bit).
    sub = 16 if min(jnp.dtype(x.dtype).itemsize, out_dtype.itemsize) < 4 else 8

    # --- batch tiling --------------------------------------------------------
    tm = _round_up(min(block_m, _round_up(B, sub)), sub)
    # v7x megacore: aim for >=2 batch tiles so the "parallel" axis actually
    # splits across both TensorCores (no-op / harmless on v5e & v6e).
    if _cdiv(B, tm) == 1 and tm >= 2 * sub:
        tm = _round_up(_cdiv(B, 2), sub)

    # --- VMEM budget: capacity-derived; shrink tm rather than overcommit -----
    try:
        vmem_cap = int(pltpu.get_tpu_info().vmem_capacity_bytes)
    except Exception:
        vmem_cap = 64 * 2**20          # conservative default (v7x per-TC)
    vmem_budget = int(min(0.6 * vmem_cap, 96 * 2**20))

    x_bytes = jnp.dtype(x.dtype).itemsize
    w_bytes = jnp.dtype(w1.dtype).itemsize

    def vmem_need(t):
        return (2 * t * d_in * x_bytes                       # x tiles (double-buffered)
                + 2 * t * d_out * out_dtype.itemsize         # out tiles (double-buffered)
                + (d_in * h_dim + h_dim * d_out) * w_bytes   # weights (single-buffered)
                + (h_dim + d_out) * 4                        # biases (f32)
                + t * h_dim * 4)                             # hidden f32 intermediate

    while vmem_need(tm) > vmem_budget and tm > sub:
        tm = max(sub, _round_up(tm // 2, sub))

    b_p = _round_up(B, tm)
    grid = (b_p // tm,)

    # Only the batch axis is (possibly) padded; feature dims stay un-padded.
    x_in = x if b_p == B else jnp.pad(x, ((0, b_p - B), (0, 0)))

    vmem_limit = int(min(vmem_budget, max(vmem_need(tm) + (4 << 20), 16 << 20)))

    # Constant-index (VMEM-resident) specs: single buffer, not double.
    resident = functools.partial(pl.BlockSpec, pipeline_mode=pl.Buffered(1))

    out = pl.pallas_call(
        _feature_net_kernel,
        out_shape=jax.ShapeDtypeStruct((b_p, d_out), out_dtype),
        grid_spec=pltpu.PrefetchScalarGridSpec(
            num_scalar_prefetch=0,
            grid=grid,
            in_specs=[
                # Activations: batch-tiled -> pipelined HBM<->VMEM DMA.
                # TODO(synk): sweep pl.Buffered(3) on this spec if the x DMA is
                # exposed for very small feature dims.
                pl.BlockSpec((tm, d_in), lambda i: (i, 0)),
                # Weights / biases: constant block index -> stay VMEM-resident.
                resident((d_in, h_dim), lambda i: (0, 0)),
                resident((1, h_dim), lambda i: (0, 0)),
                resident((h_dim, d_out), lambda i: (0, 0)),
                resident((1, d_out), lambda i: (0, 0)),
            ],
            out_specs=pl.BlockSpec((tm, d_out), lambda i: (i, 0)),
        ),
        compiler_params=pltpu.CompilerParams(
            # Batch tiles are independent -> shard across both v7x TensorCores.
            dimension_semantics=("parallel",),
            vmem_limit_bytes=vmem_limit,
        ),
    )(x_in, w1, b1, w2, b2)

    return out if b_p == B else out[:B]


def init_params(key, input_dim, hidden_dim, output_dim):
    # Deterministic synthetic init (mimics PyTorch uniform(-1/sqrt(fan_in), ...)).
    k1, k2, k3, k4 = jax.random.split(key, 4)
    bound1 = 1.0 / jnp.sqrt(input_dim)
    bound2 = 1.0 / jnp.sqrt(hidden_dim)
    # Stored as (in, out) == transpose of PyTorch's (out, in) weight layout.
    w1 = jax.random.uniform(k1, (input_dim, hidden_dim), jnp.float32, -bound1, bound1)
    b1 = jax.random.uniform(k2, (hidden_dim,), jnp.float32, -bound1, bound1)
    w2 = jax.random.uniform(k3, (hidden_dim, output_dim), jnp.float32, -bound2, bound2)
    b2 = jax.random.uniform(k4, (output_dim,), jnp.float32, -bound2, bound2)
    return w1, b1, w2, b2


if __name__ == "__main__":
    key = jax.random.PRNGKey(0)
    batch, input_dim, hidden_dim, output_dim = 8, 32, 64, 16

    kx, kp = jax.random.split(key)
    x = jax.random.normal(kx, (batch, input_dim), jnp.float32)
    w1_f32, b1_f32, w2_f32, b2_f32 = init_params(kp, input_dim, hidden_dim, output_dim)

    # One-time parameter prep (hoisted out of the per-call forward).
    w1, b1, w2, b2 = prepare_params(w1_f32, b1_f32, w2_f32, b2_f32)

    out = feature_net_forward(x, w1, b1, w2, b2)
    out = jax.block_until_ready(out)

    # Pure-JAX f32 reference. Tolerances account for bf16 MXU operands + bf16 output.
    ref = jnp.maximum(x @ w1_f32 + b1_f32[None, :], 0.0) @ w2_f32 + b2_f32[None, :]
    assert out.shape == (batch, output_dim), out.shape
    err = float(jnp.max(jnp.abs(out.astype(jnp.float32) - ref)))
    assert jnp.allclose(out.astype(jnp.float32), ref, atol=3e-2, rtol=3e-2), err

    print("KERNEL_OK")
</pallas_src>

<mosaic_0001>
module attributes {stable_mosaic.version = 11 : i64} {
  func.func @_feature_net_kernel(%arg0: i32, %arg1: memref<16x32xf32, #tpu.memory_space<vmem>>, %arg2: memref<32x64xbf16, #tpu.memory_space<vmem>>, %arg3: memref<1x64xf32, #tpu.memory_space<vmem>>, %arg4: memref<64x16xbf16, #tpu.memory_space<vmem>>, %arg5: memref<1x16xf32, #tpu.memory_space<vmem>>, %arg6: memref<16x16xbf16, #tpu.memory_space<vmem>>) attributes {dimension_semantics = [#tpu.dimension_semantics<parallel>], iteration_bounds = array<i64: 1>, scalar_prefetch = 0 : i64, scratch_operands = 0 : i64, tpu.core_type = #tpu.core_type<tc>, window_params = [{transform_indices = @transform_0, window_bounds = array<i64: 16, 32>}, {pipeline_mode = #tpu.pipeline_mode<synchronous>, transform_indices = @transform_1, window_bounds = array<i64: 32, 64>}, {pipeline_mode = #tpu.pipeline_mode<synchronous>, transform_indices = @transform_2, window_bounds = array<i64: 1, 64>}, {pipeline_mode = #tpu.pipeline_mode<synchronous>, transform_indices = @transform_3, window_bounds = array<i64: 64, 16>}, {pipeline_mode = #tpu.pipeline_mode<synchronous>, transform_indices = @transform_4, window_bounds = array<i64: 1, 16>}, {transform_indices = @transform_5, window_bounds = array<i64: 16, 16>}]} {
    %c0 = arith.constant 0 : index
    %c0_0 = arith.constant 0 : index
    %0 = vector.load %arg1[%c0, %c0_0] : memref<16x32xf32, #tpu.memory_space<vmem>>, vector<16x32xf32>
    %1 = arith.truncf %0 : vector<16x32xf32> to vector<16x32xbf16>
    %c0_1 = arith.constant 0 : index
    %c0_2 = arith.constant 0 : index
    %2 = vector.load %arg2[%c0_1, %c0_2] : memref<32x64xbf16, #tpu.memory_space<vmem>>, vector<32x64xbf16>
    %cst = arith.constant dense<0.000000e+00> : vector<16x64xf32>
    %3 = tpu.matmul %1, %2, %cst {dimension_numbers = #tpu.dot_dimension_numbers<[1], [0], [0], [1], [0, 0, 1, 1], [], []>} : vector<16x32xbf16>, vector<32x64xbf16>, vector<16x64xf32> -> vector<16x64xf32>
    %c0_3 = arith.constant 0 : index
    %c0_4 = arith.constant 0 : index
    %4 = vector.load %arg3[%c0_3, %c0_4] : memref<1x64xf32, #tpu.memory_space<vmem>>, vector<1x64xf32>
    %5 = vector.broadcast %4 : vector<1x64xf32> to vector<16x64xf32>
    %6 = arith.addf %3, %5 : vector<16x64xf32>
    %cst_5 = arith.constant 0.000000e+00 : f32
    %7 = vector.broadcast %cst_5 : f32 to vector<16x64xf32>
    %8 = arith.maximumf %6, %7 : vector<16x64xf32>
    %9 = arith.truncf %8 : vector<16x64xf32> to vector<16x64xbf16>
    %c0_6 = arith.constant 0 : index
    %c0_7 = arith.constant 0 : index
    %10 = vector.load %arg4[%c0_6, %c0_7] : memref<64x16xbf16, #tpu.memory_space<vmem>>, vector<64x16xbf16>
    %cst_8 = arith.constant dense<0.000000e+00> : vector<16x16xf32>
    %11 = tpu.matmul %9, %10, %cst_8 {dimension_numbers = #tpu.dot_dimension_numbers<[1], [0], [0], [1], [0, 0, 1, 1], [], []>} : vector<16x64xbf16>, vector<64x16xbf16>, vector<16x16xf32> -> vector<16x16xf32>
    %c0_9 = arith.constant 0 : index
    %c0_10 = arith.constant 0 : index
    %12 = vector.load %arg5[%c0_9, %c0_10] : memref<1x16xf32, #tpu.memory_space<vmem>>, vector<1x16xf32>
    %13 = vector.broadcast %12 : vector<1x16xf32> to vector<16x16xf32>
    %14 = arith.addf %11, %13 : vector<16x16xf32>
    %15 = arith.truncf %14 : vector<16x16xf32> to vector<16x16xbf16>
    %c0_11 = arith.constant 0 : index
    %c0_12 = arith.constant 0 : index
    %16 = vector.load %arg6[%c0_11, %c0_12] : memref<16x16xbf16, #tpu.memory_space<vmem>>, vector<16x16xbf16>
    tpu.vector_store %arg6[%c0_11, %c0_12], %15 {strides = array<i32>} : memref<16x16xbf16, #tpu.memory_space<vmem>>, vector<16x16xbf16>,
    return
  }
  func.func @transform_0(%arg0: i32) -> (i32, i32) {
    %c0_i32 = arith.constant 0 : i32
    %c0_i32_0 = arith.constant 0 : i32
    return %arg0, %c0_i32 : i32, i32
  }
  func.func @transform_1(%arg0: i32) -> (i32, i32) {
    %c0_i32 = arith.constant 0 : i32
    %c0_i32_0 = arith.constant 0 : i32
    %c0_i32_1 = arith.constant 0 : i32
    return %c0_i32, %c0_i32_0 : i32, i32
  }
  func.func @transform_2(%arg0: i32) -> (i32, i32) {
    %c0_i32 = arith.constant 0 : i32
    %c0_i32_0 = arith.constant 0 : i32
    %c0_i32_1 = arith.constant 0 : i32
    return %c0_i32, %c0_i32_0 : i32, i32
  }
  func.func @transform_3(%arg0: i32) -> (i32, i32) {
    %c0_i32 = arith.constant 0 : i32
    %c0_i32_0 = arith.constant 0 : i32
    %c0_i32_1 = arith.constant 0 : i32
    return %c0_i32, %c0_i32_0 : i32, i32
  }
  func.func @transform_4(%arg0: i32) -> (i32, i32) {
    %c0_i32 = arith.constant 0 : i32
    %c0_i32_0 = arith.constant 0 : i32
    %c0_i32_1 = arith.constant 0 : i32
    return %c0_i32, %c0_i32_0 : i32, i32
  }
  func.func @transform_5(%arg0: i32) -> (i32, i32) {
    %c0_i32 = arith.constant 0 : i32
    %c0_i32_0 = arith.constant 0 : i32
    return %arg0, %c0_i32 : i32, i32
  }
}

</mosaic_0001>

<llo_original>
// kernel: tpu_custom_call.1
$region0: #{tpu_custom_call.1}
  #allocation0 [shape = 'u32[]', space=smem, size = 0x4, offset = 0x4, fixed_abs, tag = 'smem constant byte address 0x4 - core index']
  #allocation1 [shape = 'u32[144,128]{1,0:T(1,128)}', space=vmem, size = 0x12000, scoped, tag = 'internal scratch']
  %s0 = inlined_call_operand.vmem [shape: f32[16,32], index: 0, kind: input, shape index: {}]
  %s1 = inlined_call_operand.vmem [shape: bf16[32,64], index: 1, kind: input, shape index: {}]
  %s2 = inlined_call_operand.vmem [shape: f32[1,64], index: 2, kind: input, shape index: {}]
  %s3 = inlined_call_operand.vmem [shape: bf16[64,16], index: 3, kind: input, shape index: {}]
  %s4 = inlined_call_operand.vmem [shape: f32[1,16], index: 4, kind: input, shape index: {}]
  %s5 = inlined_call_operand.hbm [shape: bf16[16,16], index: 5, kind: output, shape index: {}]
  %s6 = sld [smem:[#allocation0]]
  $region30: #{tpu_custom_call.1} parent=0
    _
  %s8 = ssub.s32 1, %s6
  %s9 = scalar_select 0, %s8, %s6
  $region1: #{tpu_custom_call.1} parent=0
    #allocation2 [shape = 'u8[4096]{0}', space=vmem, size = 0x1000, scoped, tag = 'output window, operand 0, single buffered']
    #allocation3 [shape = 's32[1]{0}', space=sflag, size = 0x4, scoped, tag = 'scoped memory for tpu_custom_call.1']
    %10 = vsyncpa [#allocation3], 0
    // Predicated region
    $region2: #{tpu_custom_call.1} parent=1 // pred_check
      _
    $region3: #{tpu_custom_call.1} parent=1 // pred_check_branch
      %12 = sbr.rel (0) target = $region5
    $region4: #{tpu_custom_call.1} parent=1 // pred_region
      _
    $region5: #{tpu_custom_call.1} parent=1 // pred_fallthru
      _
    // Predicated region
    $region6: #{tpu_custom_call.1} parent=1 // pred_check
      _
    $region7: #{tpu_custom_call.1} parent=1 // pred_check_branch
      %14 = sbr.rel (0) target = $region9
    $region8: #{tpu_custom_call.1} parent=1 // pred_region
      _
    $region9: #{tpu_custom_call.1} parent=1 // pred_fallthru
      _
    // Predicated region
    $region10: #{tpu_custom_call.1} parent=1 // pred_check
      _
    $region11: #{tpu_custom_call.1} parent=1 // pred_check_branch
      %16 = sbr.rel (0) target = $region13
    $region12: #{tpu_custom_call.1} parent=1 // pred_region
      _
    $region13: #{tpu_custom_call.1} parent=1 // pred_fallthru
      _
    // Predicated region
    $region14: #{tpu_custom_call.1} parent=1 // pred_check
      _
    $region15: #{tpu_custom_call.1} parent=1 // pred_check_branch
      %18 = sbr.rel (0) target = $region17
    $region16: #{tpu_custom_call.1} parent=1 // pred_region
      _
    $region17: #{tpu_custom_call.1} parent=1 // pred_fallthru
      _
    // Predicated region
    $region18: #{tpu_custom_call.1} parent=1 // pred_check
      _
    $region19: #{tpu_custom_call.1} parent=1 // pred_check_branch
      %20 = sbr.rel (0) target = $region21
    $region20: #{tpu_custom_call.1} parent=1 // pred_region
      _
    $region21: #{tpu_custom_call.1} parent=1 // pred_fallthru
      _
    %v22 = vld [vmem:[%s0] sm:$0xff]
    %v23 = vld [vmem:[%s0 + $0x8] sm:$0xff]
    %v24 = vpack.c.bf16 %v23, %v22
    %v25 = vld [vmem:[%s1] sm:$0xf]
    %v26 = vld [vmem:[%s1 + $0x4] sm:$0xf]
    %v27 = vld [vmem:[%s1 + $0x8] sm:$0xf]
    %v28 = vld [vmem:[%s1 + $0xc] sm:$0xf]
    %v29 = vld [vmem:[%s2] sm:$0x1]
    %v31 = vlaneseq
    %v32 = vshrl.u32 %v31, 7
    %v33 = vsub.s32 0, %v32
    %v34 = vrot.slane %v29, %v33
    %v40 = vunpack.c.l.b16 %v25
    %v41 = vunpack.c.l.b16 %v26
    %v42 = vunpack.c.l.b16 %v27
    %v43 = vunpack.c.l.b16 %v28
    %v44 = vpack.c.b16 %v41, %v40
    %v45 = vpack.c.b16 %v43, %v42
    %vm48 = vcmask 261120
    %v50 = vsel %vm48, %v24, 0
    %52 = vmatprep.subr.bf16.mxu0 0
    %53 = vmatpush1.bf16.msra.mxu0 0
    %54 = vmatprep.subr.bf16.mxu0 0
    %55 = vmatpush1.bf16.msra.mxu0 0
    %56 = vmatprep.subr.bf16.mxu0 0
    %57 = vmatpush1.bf16.msra.mxu0 0
    %58 = vmatprep.subr.bf16.mxu0 0
    %59 = vmatpush1.bf16.msra.mxu0 0
    %60 = vmatprep.subr.bf16.mxu0 0
    %61 = vmatpush1.bf16.msra.mxu0 0
    %62 = vmatprep.subr.bf16.mxu0 0
    %63 = vmatpush1.bf16.msra.mxu0 0
    %64 = vmatprep.subr.bf16.mxu0 0
    %65 = vmatpush1.bf16.msra.mxu0 %v45
    %66 = vmatprep.subr.bf16.mxu0 0
    %67 = vmatpush1.bf16.msra.mxu0 %v44
    %68 = vmatprep.subr.bf16.mxu0 0
    %69 = vmatpush2.bf16.msra.mxu0 0
    %70 = vmatprep.subr.bf16.mxu0 0
    %71 = vmatpush2.bf16.msra.mxu0 0
    %72 = vmatprep.subr.bf16.mxu0 0
    %73 = vmatpush2.bf16.msra.mxu0 0
    %74 = vmatprep.subr.bf16.mxu0 0
    %75 = vmatpush2.bf16.msra.mxu0 0
    %76 = vmatprep.subr.bf16.mxu0 0
    %77 = vmatpush2.bf16.msra.mxu0 0
    %78 = vmatprep.subr.bf16.mxu0 0
    %79 = vmatpush2.bf16.msra.mxu0 0
    %80 = vmatprep.subr.bf16.mxu0 0
    %81 = vmatpush2.bf16.msra.mxu0 0
    %82 = vmatprep.subr.bf16.mxu0 0
    %83 = vmatpush2.bf16.msra.mxu0 0
    %84 = vmatprep.mubr.bf16.mxu0 0
    %85 = vmatmul.mubr.bf16.gmra.mxu0 %v50
    %v86 = vpop.f32.mrf.mxu0
    %v87 = vadd.f32 %v34, %v86
    %v88 = vpop.f32.mrf.mxu0
    %v89 = vpop.f32.mrf.mxu0
    %v90 = vadd.f32 %v34, %v89
    %v91 = vpop.f32.mrf.mxu0
    %92 = vdwg.mxu0
    %v93 = vmax.f32 %v87, 0.0
    %v94 = vmax.f32 %v90, 0.0
    %v95 = vpack.c.bf16 %v94, %v93
    %v96 = vld [vmem:[%s3] sm:$0xf]
    %v97 = vld [vmem:[%s3 + $0x4] sm:$0xf]
    %v98 = vld [vmem:[%s3 + $0x8] sm:$0xf]
    %v99 = vld [vmem:[%s3 + $0xc] sm:$0xf]
    %v100 = vld [vmem:[%s3 + $0x10] sm:$0xf]
    %v101 = vld [vmem:[%s3 + $0x14] sm:$0xf]
    %v102 = vld [vmem:[%s3 + $0x18] sm:$0xf]
    %v103 = vld [vmem:[%s3 + $0x1c] sm:$0xf]
    %v104 = vld [vmem:[%s4] sm:$0x1]
    %v106 = vlaneseq
    %v107 = vshrl.u32 %v106, 7
    %v108 = vsub.s32 0, %v107
    %v109 = vrot.slane %v104, %v108
    %v119 = vunpack.c.l.b16 %v96
    %v120 = vunpack.c.l.b16 %v97
    %v121 = vunpack.c.l.b16 %v98
    %v122 = vunpack.c.l.b16 %v99
    %v123 = vunpack.c.l.b16 %v100
    %v124 = vunpack.c.l.b16 %v101
    %v125 = vunpack.c.l.b16 %v102
    %v126 = vunpack.c.l.b16 %v103
    %v127 = vpack.c.b16 %v120, %v119
    %v128 = vpack.c.b16 %v122, %v121
    %v129 = vpack.c.b16 %v124, %v123
    %v130 = vpack.c.b16 %v126, %v125
    %vm135 = vcmask 523264
    %v137 = vsel %vm135, %v95, 0
    %139 = vmatprep.subr.bf16.mxu0 0
    %140 = vmatpush1.bf16.msra.mxu0 0
    %141 = vmatprep.subr.bf16.mxu0 0
    %142 = vmatpush1.bf16.msra.mxu0 0
    %143 = vmatprep.subr.bf16.mxu0 0
    %144 = vmatpush1.bf16.msra.mxu0 0
    %145 = vmatprep.subr.bf16.mxu0 0
    %146 = vmatpush1.bf16.msra.mxu0 0
    %147 = vmatprep.subr.bf16.mxu0 0
    %148 = vmatpush1.bf16.msra.mxu0 %v130
    %149 = vmatprep.subr.bf16.mxu0 0
    %150 = vmatpush1.bf16.msra.mxu0 %v129
    %151 = vmatprep.subr.bf16.mxu0 0
    %152 = vmatpush1.bf16.msra.mxu0 %v128
    %153 = vmatprep.subr.bf16.mxu0 0
    %154 = vmatpush1.bf16.msra.mxu0 %v127
    %155 = vmatprep.subr.bf16.mxu0 0
    %156 = vmatpush2.bf16.msra.mxu0 0
    %157 = vmatprep.subr.bf16.mxu0 0
    %158 = vmatpush2.bf16.msra.mxu0 0
    %159 = vmatprep.subr.bf16.mxu0 0
    %160 = vmatpush2.bf16.msra.mxu0 0
    %161 = vmatprep.subr.bf16.mxu0 0
    %162 = vmatpush2.bf16.msra.mxu0 0
    %163 = vmatprep.subr.bf16.mxu0 0
    %164 = vmatpush2.bf16.msra.mxu0 0
    %165 = vmatprep.subr.bf16.mxu0 0
    %166 = vmatpush2.bf16.msra.mxu0 0
    %167 = vmatprep.subr.bf16.mxu0 0
    %168 = vmatpush2.bf16.msra.mxu0 0
    %169 = vmatprep.subr.bf16.mxu0 0
    %170 = vmatpush2.bf16.msra.mxu0 0
    %171 = vmatprep.mubr.bf16.mxu0 0
    %172 = vmatmul.mubr.bf16.gmra.mxu0 %v137
    %v173 = vpop.f32.mrf.mxu0
    %v174 = vadd.f32 %v109, %v173
    %v175 = vpop.f32.mrf.mxu0
    %v176 = vpop.f32.mrf.mxu0
    %v177 = vadd.f32 %v109, %v176
    %v178 = vpop.f32.mrf.mxu0
    %179 = vdwg.mxu0
    %v180 = vpack.c.bf16 %v177, %v174
    %v182 = vunpack.c.l.b16 %v180
    %v183 = vunpack.c.h.b16 %v180
    %v184 = vpack.c.b16 %v182, %v182
    %v185 = vpack.c.b16 %v183, %v183
    %vm188 = vcmask 125952
    %189 = vst.msk [vmem:[#allocation2] sm:$0xf] %vm188, %v184
    %190 = vst.msk [vmem:[#allocation2 + $0x4] sm:$0xf] %vm188, %v185
    // Predicated region
    $region22: #{tpu_custom_call.1} parent=1 // pred_check
      _
    $region23: #{tpu_custom_call.1} parent=1 // pred_check_branch
      %192 = sbr.rel (0) target = $region25
    $region24: #{tpu_custom_call.1} parent=1 // pred_region
      %s194 = ssub.s32 128, 128
      %195 = vsyncadd [#allocation3], %s194
      %s196 = sshll.u32 [#allocation2], 4
      %s197 = int_to_ptr.vmem [resolvable:$true] %s196
      %202 = dma.vmem_to_hbm [thread:$0]  %s197, 128, %s5, [#allocation3], 64, 64, 4
    $region25: #{tpu_custom_call.1} parent=1 // pred_fallthru
      _
    // Predicated region
    $region26: #{tpu_custom_call.1} parent=1 // pred_check
      _
    $region27: #{tpu_custom_call.1} parent=1 // pred_check_branch
      %204 = sbr.rel (0) target = $region29
    $region28: #{tpu_custom_call.1} parent=1 // pred_region
      %205 = dma.done [#allocation3], 128
    $region29: #{tpu_custom_call.1} parent=1 // pred_fallthru
      _
    %206 = vsyncpa [#allocation3], 1

</llo_original>
